<compile_context>
chip_gen: v7x
topology: tpu7x:2x2x1
jax: 0.10.0
libtpu: 0.0.40
codegen_flags: <defaults>
</compile_context>

<pallas_src>
import functools

import jax
import jax.numpy as jnp
from jax.experimental import pallas as pl
from jax.experimental.pallas import tpu as pltpu


def _round_up(x, m):
    return ((x + m - 1) // m) * m


def _cat_phist_actor_kernel(obs_ref, mask_ref, avail_ref, pool_ref,
                            wfe_ref, be_ref, w1_ref, b1_ref, w2_ref, b2_ref,
                            out_ref, *, num_features):
    f32 = jnp.float32
    bf16 = jnp.bfloat16

    # masked slots -> index 0, the zero padding row of the (fused) embedding table
    cat_idx = (obs_ref[...] + 1) * mask_ref[...]            # (TB*T, F) int32
    rows = cat_idx.shape[0]
    vpad = wfe_ref.shape[0]

    # Per-feature compare-add against a 2-D lane iota; never materializes a (rows, F, V) one-hot.
    iota_v = jax.lax.broadcasted_iota(jnp.int32, (rows, vpad), 1)
    counts = jnp.zeros((rows, vpad), f32)
    for f in range(num_features):                           # F is small and static
        counts = counts + (cat_idx[:, f:f + 1] == iota_v).astype(f32)

    # EmbeddingPool + embed_net's first Linear fused: wfe = table @ We  (V_pad, D_pad), bf16.
    h = jnp.dot(counts.astype(bf16), wfe_ref[...],
                preferred_element_type=f32) + be_ref[...]   # (TB*T, D_pad) f32
    h = jnp.maximum(h, 0.0)

    # .mean(dim=1) over the history axis via a block-averaging matmul (keeps everything 2-D).
    embed = jnp.dot(pool_ref[...], h, preferred_element_type=f32)   # (TB, D_pad)

    # actor MLP; 1/temperature is pre-folded into w2 / b2.
    h2 = jnp.dot(embed.astype(bf16), w1_ref[...],
                 preferred_element_type=f32) + b1_ref[...]
    h2 = jnp.maximum(h2, 0.0)
    logits = jnp.dot(h2.astype(bf16), w2_ref[...],
                     preferred_element_type=f32) + b2_ref[...]      # (TB, A_pad)

    # availability constraint (and padded action lanes) -> -1e12, applied post-temperature
    # exactly as in the PyTorch module; then Categorical's normalized logits.
    logits = jnp.where(avail_ref[...] != 0, logits, jnp.float32(-1.0e12))
    m = jnp.max(logits, axis=-1, keepdims=True)
    lse = m + jnp.log(jnp.sum(jnp.exp(logits - m), axis=-1, keepdims=True))
    out_ref[...] = logits - lse


def prepare_params(params, temperature=1.0):
    """One-time param prep: fuse table into W_e, fold 1/temperature, lane-pad, cast to bf16."""
    table, we, be = params["table"], params["we"], params["be"]
    w1, b1, w2, b2 = params["w1"], params["b1"], params["w2"], params["b2"]
    V = table.shape[0]
    D, H, A = we.shape[1], w1.shape[1], w2.shape[1]
    V_pad, D_pad = _round_up(V, 128), _round_up(D, 128)
    H_pad, A_pad = _round_up(H, 128), _round_up(A, 128)

    wfe = jnp.dot(table, we, preferred_element_type=jnp.float32)     # (V, D)
    inv_t = jnp.float32(1.0 / temperature)

    def pad2(x, r, c):
        return jnp.pad(x, ((0, r - x.shape[0]), (0, c - x.shape[1])))

    return {
        "wfe": pad2(wfe, V_pad, D_pad).astype(jnp.bfloat16),
        "be": pad2(be, 1, D_pad).astype(jnp.float32),
        "w1": pad2(w1, D_pad, H_pad).astype(jnp.bfloat16),
        "b1": pad2(b1, 1, H_pad).astype(jnp.float32),
        "w2": pad2(w2 * inv_t, H_pad, A_pad).astype(jnp.bfloat16),
        "b2": pad2(b2 * inv_t, 1, A_pad).astype(jnp.float32),
        "num_actions": A,
        "dims": (V_pad, D_pad, H_pad, A_pad),
    }


def cat_phist_actor(observed, mask, availability, prep,
                    logit_constraint=True, batch_tile=None):
    """Returns the normalized logits (Categorical.logits) of shape (B, num_actions)."""
    B, T, F = observed.shape
    A = prep["num_actions"]
    V_pad, D_pad, H_pad, A_pad = prep["dims"]

    TB = B if batch_tile is None else batch_tile
    assert B % TB == 0, "batch must be divisible by the batch tile"
    TBT = TB * T
    assert TB == B or (TB % 8 == 0), "batch tile should be a multiple of 8"

    obs_flat = observed.reshape(B * T, F).astype(jnp.int32)
    mask_flat = mask.reshape(B * T, F).astype(jnp.int32)

    avail = availability.astype(jnp.int32)
    if not logit_constraint:
        avail = jnp.ones_like(avail)
    # padded action lanes get 0 so they are masked to -1e12 before the logsumexp
    avail_eff = jnp.pad(avail, ((0, 0), (0, A_pad - A)))

    # block-averaging matrix implementing .mean over the history axis for one batch tile
    pool = jnp.kron(jnp.eye(TB, dtype=jnp.float32),
                    jnp.full((1, T), 1.0 / T, jnp.float32))          # (TB, TB*T)

    kernel = functools.partial(_cat_phist_actor_kernel, num_features=F)

    out = pl.pallas_call(
        kernel,
        out_shape=jax.ShapeDtypeStruct((B, A_pad), jnp.float32),
        grid=(B // TB,),
        in_specs=[
            pl.BlockSpec((TBT, F), lambda i: (i, 0)),        # observed  (flattened B*T rows)
            pl.BlockSpec((TBT, F), lambda i: (i, 0)),        # mask
            pl.BlockSpec((TB, A_pad), lambda i: (i, 0)),     # availability (effective, padded)
            pl.BlockSpec((TB, TBT), lambda i: (0, 0)),       # history-mean pooling matrix
            pl.BlockSpec((V_pad, D_pad), lambda i: (0, 0)),  # fused table @ W_e   (bf16)
            pl.BlockSpec((1, D_pad), lambda i: (0, 0)),      # b_e
            pl.BlockSpec((D_pad, H_pad), lambda i: (0, 0)),  # actor w1            (bf16)
            pl.BlockSpec((1, H_pad), lambda i: (0, 0)),      # actor b1
            pl.BlockSpec((H_pad, A_pad), lambda i: (0, 0)),  # actor w2 / temp     (bf16)
            pl.BlockSpec((1, A_pad), lambda i: (0, 0)),      # actor b2 / temp
        ],
        out_specs=pl.BlockSpec((TB, A_pad), lambda i: (i, 0)),
        compiler_params=pltpu.CompilerParams(dimension_semantics=("parallel",)),
    )(obs_flat, mask_flat, avail_eff, pool,
      prep["wfe"], prep["be"], prep["w1"], prep["b1"], prep["w2"], prep["b2"])

    return out[:, :A]


def init_params(key, num_embeddings, embed_dim, hist_dim, hidden, num_actions):
    kt, ke, kb, k1, k2 = jax.random.split(key, 5)
    V = num_embeddings + 1                                   # +1 for the (observed + 1) shift
    table = 0.1 * jax.random.normal(kt, (V, embed_dim), jnp.float32)
    table = table.at[0].set(0.0)                             # padding_idx = 0
    we = 0.1 * jax.random.normal(ke, (embed_dim, hist_dim), jnp.float32)
    be = 0.01 * jax.random.normal(kb, (1, hist_dim), jnp.float32)
    w1 = 0.1 * jax.random.normal(k1, (hist_dim, hidden), jnp.float32)
    b1 = jnp.zeros((1, hidden), jnp.float32)
    w2 = 0.1 * jax.random.normal(k2, (hidden, num_actions), jnp.float32)
    b2 = jnp.zeros((1, num_actions), jnp.float32)
    return {"table": table, "we": we, "be": be,
            "w1": w1, "b1": b1, "w2": w2, "b2": b2}


def ref_cat_phist_actor(observed, mask, availability, params,
                        temperature=1.0, logit_constraint=True):
    """Pure-JAX f32 reference of the PyTorch forward (for correctness checking)."""
    cat_idx = (observed.astype(jnp.int32) + 1) * mask.astype(jnp.int32)   # (B, T, F)
    hist_embed = jnp.sum(params["table"][cat_idx], axis=2)                # (B, T, E)
    h = jax.nn.relu(hist_embed @ params["we"] + params["be"])             # (B, T, D)
    embed = jnp.mean(h, axis=1)                                           # (B, D)
    h2 = jax.nn.relu(embed @ params["w1"] + params["b1"])
    logits = (h2 @ params["w2"] + params["b2"]) / temperature
    if logit_constraint:
        logits = jnp.where(availability != 0, logits, jnp.float32(-1.0e12))
    return jax.nn.log_softmax(logits, axis=-1)


if __name__ == "__main__":
    key = jax.random.PRNGKey(0)

    B, T, F = 16, 8, 4     # batch, history length, categorical features per step
    num_embeddings = 15    # vocab before the +1 shift -> 16-row table
    embed_dim = 8          # config.categorical_embed_dim
    hist_dim = 16          # config.hist_embed_dims = [16]
    hidden = 32            # config.actor_layers = [32]
    num_actions = 8
    temperature = 1.0

    k_obs, k_mask, k_avail, k_params = jax.random.split(key, 4)
    observed = jax.random.randint(k_obs, (B, T, F), 0, num_embeddings, jnp.int32)
    mask = jax.random.bernoulli(k_mask, 0.8, (B, T, F)).astype(jnp.int32)
    availability = jax.random.bernoulli(k_avail, 0.7, (B, num_actions)).astype(jnp.int32)
    availability = availability.at[:, 0].set(1)   # keep the distribution non-degenerate

    params = init_params(k_params, num_embeddings, embed_dim, hist_dim, hidden, num_actions)
    prep = prepare_params(params, temperature=temperature)

    log_probs = cat_phist_actor(observed, mask, availability, prep,
                                logit_constraint=True, batch_tile=8)
    jax.block_until_ready(log_probs)

    ref = ref_cat_phist_actor(observed, mask, availability, params,
                              temperature=temperature, logit_constraint=True)

    assert log_probs.shape == (B, num_actions)
    assert bool(jnp.all(jnp.isfinite(log_probs)))
    assert bool(jnp.allclose(log_probs, ref, atol=2e-2, rtol=2e-2)), "mismatch vs JAX reference"
    print("KERNEL_OK")
</pallas_src>

<mosaic_0001>
module attributes {stable_mosaic.version = 11 : i64} {
  func.func @_cat_phist_actor_kernel(%arg0: i32, %arg1: memref<64x4xi32, #tpu.memory_space<vmem>>, %arg2: memref<64x4xi32, #tpu.memory_space<vmem>>, %arg3: memref<8x128xi32, #tpu.memory_space<vmem>>, %arg4: memref<8x64xf32, #tpu.memory_space<vmem>>, %arg5: memref<128x128xbf16, #tpu.memory_space<vmem>>, %arg6: memref<1x128xf32, #tpu.memory_space<vmem>>, %arg7: memref<128x128xbf16, #tpu.memory_space<vmem>>, %arg8: memref<1x128xf32, #tpu.memory_space<vmem>>, %arg9: memref<128x128xbf16, #tpu.memory_space<vmem>>, %arg10: memref<1x128xf32, #tpu.memory_space<vmem>>, %arg11: memref<8x128xf32, #tpu.memory_space<vmem>>) attributes {dimension_semantics = [#tpu.dimension_semantics<parallel>], iteration_bounds = array<i64: 2>, scalar_prefetch = 0 : i64, scratch_operands = 0 : i64, tpu.core_type = #tpu.core_type<tc>, window_params = [{transform_indices = @transform_0, window_bounds = array<i64: 64, 4>}, {transform_indices = @transform_1, window_bounds = array<i64: 64, 4>}, {transform_indices = @transform_2, window_bounds = array<i64: 8, 128>}, {pipeline_mode = #tpu.pipeline_mode<synchronous>, transform_indices = @transform_3, window_bounds = array<i64: 8, 64>}, {pipeline_mode = #tpu.pipeline_mode<synchronous>, transform_indices = @transform_4, window_bounds = array<i64: 128, 128>}, {pipeline_mode = #tpu.pipeline_mode<synchronous>, transform_indices = @transform_5, window_bounds = array<i64: 1, 128>}, {pipeline_mode = #tpu.pipeline_mode<synchronous>, transform_indices = @transform_6, window_bounds = array<i64: 128, 128>}, {pipeline_mode = #tpu.pipeline_mode<synchronous>, transform_indices = @transform_7, window_bounds = array<i64: 1, 128>}, {pipeline_mode = #tpu.pipeline_mode<synchronous>, transform_indices = @transform_8, window_bounds = array<i64: 128, 128>}, {pipeline_mode = #tpu.pipeline_mode<synchronous>, transform_indices = @transform_9, window_bounds = array<i64: 1, 128>}, {transform_indices = @transform_10, window_bounds = array<i64: 8, 128>}]} {
    %c0 = arith.constant 0 : index
    %c0_0 = arith.constant 0 : index
    %0 = vector.load %arg1[%c0, %c0_0] : memref<64x4xi32, #tpu.memory_space<vmem>>, vector<64x4xi32>
    %c1_i32 = arith.constant 1 : i32
    %1 = vector.broadcast %c1_i32 : i32 to vector<64x4xi32>
    %2 = arith.addi %0, %1 : vector<64x4xi32>
    %c0_1 = arith.constant 0 : index
    %c0_2 = arith.constant 0 : index
    %3 = vector.load %arg2[%c0_1, %c0_2] : memref<64x4xi32, #tpu.memory_space<vmem>>, vector<64x4xi32>
    %4 = arith.muli %2, %3 : vector<64x4xi32>
    %5 = tpu.iota {dimensions = array<i32: 1>} : vector<64x128xi32>
    %cst = arith.constant 0.000000e+00 : f32
    %6 = vector.broadcast %cst : f32 to vector<64x128xf32>
    %7 = vector.extract_strided_slice %4 {offsets = [0, 0], sizes = [64, 1], strides = [1, 1]} : vector<64x4xi32> to vector<64x1xi32>
    %8 = vector.broadcast %7 : vector<64x1xi32> to vector<64x128xi32>
    %9 = arith.cmpi eq, %8, %5 : vector<64x128xi32>
    %10 = arith.extui %9 : vector<64x128xi1> to vector<64x128xi32>
    %11 = arith.sitofp %10 : vector<64x128xi32> to vector<64x128xf32>
    %12 = arith.addf %6, %11 : vector<64x128xf32>
    %13 = vector.extract_strided_slice %4 {offsets = [0, 1], sizes = [64, 1], strides = [1, 1]} : vector<64x4xi32> to vector<64x1xi32>
    %14 = vector.broadcast %13 : vector<64x1xi32> to vector<64x128xi32>
    %15 = arith.cmpi eq, %14, %5 : vector<64x128xi32>
    %16 = arith.extui %15 : vector<64x128xi1> to vector<64x128xi32>
    %17 = arith.sitofp %16 : vector<64x128xi32> to vector<64x128xf32>
    %18 = arith.addf %12, %17 : vector<64x128xf32>
    %19 = vector.extract_strided_slice %4 {offsets = [0, 2], sizes = [64, 1], strides = [1, 1]} : vector<64x4xi32> to vector<64x1xi32>
    %20 = vector.broadcast %19 : vector<64x1xi32> to vector<64x128xi32>
    %21 = arith.cmpi eq, %20, %5 : vector<64x128xi32>
    %22 = arith.extui %21 : vector<64x128xi1> to vector<64x128xi32>
    %23 = arith.sitofp %22 : vector<64x128xi32> to vector<64x128xf32>
    %24 = arith.addf %18, %23 : vector<64x128xf32>
    %25 = vector.extract_strided_slice %4 {offsets = [0, 3], sizes = [64, 1], strides = [1, 1]} : vector<64x4xi32> to vector<64x1xi32>
    %26 = vector.broadcast %25 : vector<64x1xi32> to vector<64x128xi32>
    %27 = arith.cmpi eq, %26, %5 : vector<64x128xi32>
    %28 = arith.extui %27 : vector<64x128xi1> to vector<64x128xi32>
    %29 = arith.sitofp %28 : vector<64x128xi32> to vector<64x128xf32>
    %30 = arith.addf %24, %29 : vector<64x128xf32>
    %31 = arith.truncf %30 : vector<64x128xf32> to vector<64x128xbf16>
    %c0_3 = arith.constant 0 : index
    %c0_4 = arith.constant 0 : index
    %32 = vector.load %arg5[%c0_3, %c0_4] : memref<128x128xbf16, #tpu.memory_space<vmem>>, vector<128x128xbf16>
    %cst_5 = arith.constant dense<0.000000e+00> : vector<64x128xf32>
    %33 = tpu.matmul %31, %32, %cst_5 {dimension_numbers = #tpu.dot_dimension_numbers<[1], [0], [0], [1], [0, 0, 1, 1], [], []>} : vector<64x128xbf16>, vector<128x128xbf16>, vector<64x128xf32> -> vector<64x128xf32>
    %c0_6 = arith.constant 0 : index
    %c0_7 = arith.constant 0 : index
    %34 = vector.load %arg6[%c0_6, %c0_7] : memref<1x128xf32, #tpu.memory_space<vmem>>, vector<1x128xf32>
    %35 = vector.broadcast %34 : vector<1x128xf32> to vector<64x128xf32>
    %36 = arith.addf %33, %35 : vector<64x128xf32>
    %cst_8 = arith.constant 0.000000e+00 : f32
    %37 = vector.broadcast %cst_8 : f32 to vector<64x128xf32>
    %38 = arith.maximumf %36, %37 : vector<64x128xf32>
    %c0_9 = arith.constant 0 : index
    %c0_10 = arith.constant 0 : index
    %39 = vector.load %arg4[%c0_9, %c0_10] : memref<8x64xf32, #tpu.memory_space<vmem>>, vector<8x64xf32>
    %cst_11 = arith.constant dense<0.000000e+00> : vector<8x128xf32>
    %40 = tpu.matmul %39, %38, %cst_11 {dimension_numbers = #tpu.dot_dimension_numbers<[1], [0], [0], [1], [0, 0, 1, 1], [], []>} : vector<8x64xf32>, vector<64x128xf32>, vector<8x128xf32> -> vector<8x128xf32>
    %41 = arith.truncf %40 : vector<8x128xf32> to vector<8x128xbf16>
    %c0_12 = arith.constant 0 : index
    %c0_13 = arith.constant 0 : index
    %42 = vector.load %arg7[%c0_12, %c0_13] : memref<128x128xbf16, #tpu.memory_space<vmem>>, vector<128x128xbf16>
    %cst_14 = arith.constant dense<0.000000e+00> : vector<8x128xf32>
    %43 = tpu.matmul %41, %42, %cst_14 {dimension_numbers = #tpu.dot_dimension_numbers<[1], [0], [0], [1], [0, 0, 1, 1], [], []>} : vector<8x128xbf16>, vector<128x128xbf16>, vector<8x128xf32> -> vector<8x128xf32>
    %c0_15 = arith.constant 0 : index
    %c0_16 = arith.constant 0 : index
    %44 = vector.load %arg8[%c0_15, %c0_16] : memref<1x128xf32, #tpu.memory_space<vmem>>, vector<1x128xf32>
    %45 = vector.broadcast %44 : vector<1x128xf32> to vector<8x128xf32>
    %46 = arith.addf %43, %45 : vector<8x128xf32>
    %cst_17 = arith.constant 0.000000e+00 : f32
    %47 = vector.broadcast %cst_17 : f32 to vector<8x128xf32>
    %48 = arith.maximumf %46, %47 : vector<8x128xf32>
    %49 = arith.truncf %48 : vector<8x128xf32> to vector<8x128xbf16>
    %c0_18 = arith.constant 0 : index
    %c0_19 = arith.constant 0 : index
    %50 = vector.load %arg9[%c0_18, %c0_19] : memref<128x128xbf16, #tpu.memory_space<vmem>>, vector<128x128xbf16>
    %cst_20 = arith.constant dense<0.000000e+00> : vector<8x128xf32>
    %51 = tpu.matmul %49, %50, %cst_20 {dimension_numbers = #tpu.dot_dimension_numbers<[1], [0], [0], [1], [0, 0, 1, 1], [], []>} : vector<8x128xbf16>, vector<128x128xbf16>, vector<8x128xf32> -> vector<8x128xf32>
    %c0_21 = arith.constant 0 : index
    %c0_22 = arith.constant 0 : index
    %52 = vector.load %arg10[%c0_21, %c0_22] : memref<1x128xf32, #tpu.memory_space<vmem>>, vector<1x128xf32>
    %53 = vector.broadcast %52 : vector<1x128xf32> to vector<8x128xf32>
    %54 = arith.addf %51, %53 : vector<8x128xf32>
    %c0_23 = arith.constant 0 : index
    %c0_24 = arith.constant 0 : index
    %55 = vector.load %arg3[%c0_23, %c0_24] : memref<8x128xi32, #tpu.memory_space<vmem>>, vector<8x128xi32>
    %c0_i32 = arith.constant 0 : i32
    %56 = vector.broadcast %c0_i32 : i32 to vector<8x128xi32>
    %57 = arith.cmpi ne, %55, %56 : vector<8x128xi32>
    %cst_25 = arith.constant -9.99999995E+11 : f32
    %58 = vector.broadcast %cst_25 : f32 to vector<8x128xf32>
    %59 = arith.select %57, %54, %58 : vector<8x128xi1>, vector<8x128xf32>
    %cst_26 = arith.constant dense<0xFF800000> : vector<8xf32>
    %60 = vector.multi_reduction <maximumf>, %59, %cst_26 [1] : vector<8x128xf32> to vector<8xf32>
    %61 = vector.shape_cast %60 : vector<8xf32> to vector<8x1xf32>
    %62 = vector.broadcast %61 : vector<8x1xf32> to vector<8x128xf32>
    %63 = arith.subf %59, %62 : vector<8x128xf32>
    %64 = math.exp %63 : vector<8x128xf32>
    %cst_27 = arith.constant dense<0.000000e+00> : vector<8xf32>
    %65 = vector.multi_reduction <add>, %64, %cst_27 [1] : vector<8x128xf32> to vector<8xf32>
    %66 = vector.shape_cast %65 : vector<8xf32> to vector<8x1xf32>
    %67 = math.log %66 : vector<8x1xf32>
    %68 = arith.addf %61, %67 : vector<8x1xf32>
    %69 = vector.broadcast %68 : vector<8x1xf32> to vector<8x128xf32>
    %70 = arith.subf %59, %69 : vector<8x128xf32>
    %c0_28 = arith.constant 0 : index
    %c0_29 = arith.constant 0 : index
    %71 = vector.load %arg11[%c0_28, %c0_29] : memref<8x128xf32, #tpu.memory_space<vmem>>, vector<8x128xf32>
    tpu.vector_store %arg11[%c0_28, %c0_29], %70 {strides = array<i32>} : memref<8x128xf32, #tpu.memory_space<vmem>>, vector<8x128xf32>,
    return
  }
  func.func @transform_0(%arg0: i32) -> (i32, i32) {
    %c0_i32 = arith.constant 0 : i32
    %c0_i32_0 = arith.constant 0 : i32
    return %arg0, %c0_i32 : i32, i32
  }
  func.func @transform_1(%arg0: i32) -> (i32, i32) {
    %c0_i32 = arith.constant 0 : i32
    %c0_i32_0 = arith.constant 0 : i32
    return %arg0, %c0_i32 : i32, i32
  }
  func.func @transform_2(%arg0: i32) -> (i32, i32) {
    %c0_i32 = arith.constant 0 : i32
    %c0_i32_0 = arith.constant 0 : i32
    return %arg0, %c0_i32 : i32, i32
  }
  func.func @transform_3(%arg0: i32) -> (i32, i32) {
    %c0_i32 = arith.constant 0 : i32
    %c0_i32_0 = arith.constant 0 : i32
    %c0_i32_1 = arith.constant 0 : i32
    return %c0_i32, %c0_i32_0 : i32, i32
  }
  func.func @transform_4(%arg0: i32) -> (i32, i32) {
    %c0_i32 = arith.constant 0 : i32
    %c0_i32_0 = arith.constant 0 : i32
    %c0_i32_1 = arith.constant 0 : i32
    return %c0_i32, %c0_i32_0 : i32, i32
  }
  func.func @transform_5(%arg0: i32) -> (i32, i32) {
    %c0_i32 = arith.constant 0 : i32
    %c0_i32_0 = arith.constant 0 : i32
    %c0_i32_1 = arith.constant 0 : i32
    return %c0_i32, %c0_i32_0 : i32, i32
  }
  func.func @transform_6(%arg0: i32) -> (i32, i32) {
    %c0_i32 = arith.constant 0 : i32
    %c0_i32_0 = arith.constant 0 : i32
    %c0_i32_1 = arith.constant 0 : i32
    return %c0_i32, %c0_i32_0 : i32, i32
  }
  func.func @transform_7(%arg0: i32) -> (i32, i32) {
    %c0_i32 = arith.constant 0 : i32
    %c0_i32_0 = arith.constant 0 : i32
    %c0_i32_1 = arith.constant 0 : i32
    return %c0_i32, %c0_i32_0 : i32, i32
  }
  func.func @transform_8(%arg0: i32) -> (i32, i32) {
    %c0_i32 = arith.constant 0 : i32
    %c0_i32_0 = arith.constant 0 : i32
    %c0_i32_1 = arith.constant 0 : i32
    return %c0_i32, %c0_i32_0 : i32, i32
  }
  func.func @transform_9(%arg0: i32) -> (i32, i32) {
    %c0_i32 = arith.constant 0 : i32
    %c0_i32_0 = arith.constant 0 : i32
    %c0_i32_1 = arith.constant 0 : i32
    return %c0_i32, %c0_i32_0 : i32, i32
  }
  func.func @transform_10(%arg0: i32) -> (i32, i32) {
    %c0_i32 = arith.constant 0 : i32
    %c0_i32_0 = arith.constant 0 : i32
    return %arg0, %c0_i32 : i32, i32
  }
}

</mosaic_0001>

<llo_original>
// kernel: tpu_custom_call.1
$region0: #{tpu_custom_call.1}
  #allocation0 [shape = 'u32[]', space=smem, size = 0x4, offset = 0x4, fixed_abs, tag = 'smem constant byte address 0x4 - core index']
  #allocation1 [shape = 'u32[144,128]{1,0:T(1,128)}', space=vmem, size = 0x12000, scoped, tag = 'internal scratch']
  %s0 = inlined_call_operand.vmem [shape: s32[128,4], index: 0, kind: input, shape index: {}]
  %s1 = inlined_call_operand.vmem [shape: s32[128,4], index: 1, kind: input, shape index: {}]
  %s2 = inlined_call_operand.vmem [shape: s32[16,128], index: 2, kind: input, shape index: {}]
  %s3 = inlined_call_operand.vmem [shape: f32[8,64], index: 3, kind: input, shape index: {}]
  %s4 = inlined_call_operand.vmem [shape: bf16[128,128], index: 4, kind: input, shape index: {}]
  %s5 = inlined_call_operand.vmem [shape: f32[1,128], index: 5, kind: input, shape index: {}]
  %s6 = inlined_call_operand.vmem [shape: bf16[128,128], index: 6, kind: input, shape index: {}]
  %s7 = inlined_call_operand.vmem [shape: f32[1,128], index: 7, kind: input, shape index: {}]
  %s8 = inlined_call_operand.vmem [shape: bf16[128,128], index: 8, kind: input, shape index: {}]
  %s9 = inlined_call_operand.vmem [shape: f32[1,128], index: 9, kind: input, shape index: {}]
  %s10 = inlined_call_operand.hbm [shape: f32[16,128], index: 10, kind: output, shape index: {}]
  %s11 = sld [smem:[#allocation0]]
  $region73: #{tpu_custom_call.1} parent=0
    _
  %s13 = ssub.s32 1, %s11
  %s14 = scalar_select 0, %s13, %s11
  $region1: #{tpu_custom_call.1} parent=0
    #allocation2 [shape = 'u8[8192]{0}', space=vmem, size = 0x2000, scoped, tag = 'output window, operand 0']
    #allocation3 [shape = 's32[2]{0}', space=sflag, size = 0x8, scoped, tag = 'scoped memory for tpu_custom_call.1']
    %15 = vsyncpa [#allocation3], 0
    %s16 = scalar_lea.sflag [#allocation3], 1
    %17 = vsyncpa %s16, 0
    loop: start=0, step=1, limit=4
    $region2: #{tpu_custom_call.1} parent=1 // loop_pre_header
      _
    $region3: #{tpu_custom_call.1} parent=1 // loop_header
      %s19 = sphi 0, %s23
      %p20 = scmp.ge.s32.totalorder %s19, 4
      %s29 = sphi 0, %s31
      %s32 = sphi 0, %s29
      %s33 = sphi 0, %s32
      %s49 = sphi 0, %s33
      %s55 = sphi 0, %s57
      %s58 = sphi 0, %s55
      %s59 = sphi 0, %s58
      %s75 = sphi 0, %s59
      %s81 = sphi 0, %s83
      %s84 = sphi 0, %s81
      %s85 = sphi 0, %s84
      %s101 = sphi 0, %s85
      %s105 = sphi 0, %s105
      %s107 = sphi 0, %s105
      %s108 = sphi 0, %s107
      %s122 = sphi 0, %s108
      %s126 = sphi 0, %s126
      %s128 = sphi 0, %s126
      %s129 = sphi 0, %s128
      %s143 = sphi 0, %s129
      %s147 = sphi 0, %s147
      %s149 = sphi 0, %s147
      %s150 = sphi 0, %s149
      %s164 = sphi 0, %s150
      %s168 = sphi 0, %s168
      %s170 = sphi 0, %s168
      %s171 = sphi 0, %s170
      %s185 = sphi 0, %s171
      %s189 = sphi 0, %s189
      %s191 = sphi 0, %s189
      %s192 = sphi 0, %s191
      %s206 = sphi 0, %s192
      %s210 = sphi 0, %s210
      %s212 = sphi 0, %s210
      %s213 = sphi 0, %s212
      %s227 = sphi 0, %s213
      %s231 = sphi 0, %s231
      %s233 = sphi 0, %s231
      %s234 = sphi 0, %s233
      %s248 = sphi 0, %s234
      %s254 = sphi 0, %s256
      %s257 = sphi 0, %s254
      %s258 = sphi 0, %s257
      %s274 = sphi 0, %s258
    $region4: #{tpu_custom_call.1} parent=1 // loop_header_branch
      %22 = sbr.rel (%p20) target = $region8
    $region5: #{tpu_custom_call.1} parent=1 // loop_body
      %s24 = ssub.s32 %s19, 1
      %s25 = ssub.s32 %s19, 2
      %s26 = sadd.s32 %s19, 1
      %s27 = ssub.s32 %s19, %s26
      %p28 = scmp.eq.s32.totalorder %s27, 0
      %s30 = sadd.s32 %s29, 1
      %s31 = scalar_select %p28, %s29, %s30
      %p34 = pneg %p28
      %p35 = scmp.eq.s32.totalorder %s19, 1
      %p36 = por %p34, %p35
      %p37 = scmp.ne.s32.totalorder %s29, %s32
      %p38 = scmp.eq.s32.totalorder %s19, 0
      %p39 = por %p37, %p38
      %p40 = scmp.ne.s32.totalorder %s29, %s32
      %p41 = scmp.eq.s32.totalorder %s24, 1
      %p42 = por %p40, %p41
      %p43 = scmp.ne.s32.totalorder %s32, %s33
      %p44 = scmp.eq.s32.totalorder %s24, 0
      %p45 = por %p43, %p44
      %p46 = scmp.ne.s32.totalorder %s32, %s33
      %p47 = scmp.eq.s32.totalorder %s25, 1
      %p48 = por %p46, %p47
      %p50 = scmp.ne.s32.totalorder %s33, %s49
      %p51 = scmp.eq.s32.totalorder %s25, 0
      %p52 = por %p50, %p51
      %s53 = ssub.s32 %s19, %s26
      %p54 = scmp.eq.s32.totalorder %s53, 0
      %s56 = sadd.s32 %s55, 1
      %s57 = scalar_select %p54, %s55, %s56
      %p60 = pneg %p54
      %p61 = scmp.eq.s32.totalorder %s19, 1
      %p62 = por %p60, %p61
      %p63 = scmp.ne.s32.totalorder %s55, %s58
      %p64 = scmp.eq.s32.totalorder %s19, 0
      %p65 = por %p63, %p64
      %p66 = scmp.ne.s32.totalorder %s55, %s58
      %p67 = scmp.eq.s32.totalorder %s24, 1
      %p68 = por %p66, %p67
      %p69 = scmp.ne.s32.totalorder %s58, %s59
      %p70 = scmp.eq.s32.totalorder %s24, 0
      %p71 = por %p69, %p70
      %p72 = scmp.ne.s32.totalorder %s58, %s59
      %p73 = scmp.eq.s32.totalorder %s25, 1
      %p74 = por %p72, %p73
      %p76 = scmp.ne.s32.totalorder %s59, %s75
      %p77 = scmp.eq.s32.totalorder %s25, 0
      %p78 = por %p76, %p77
      %s79 = ssub.s32 %s19, %s26
      %p80 = scmp.eq.s32.totalorder %s79, 0
      %s82 = sadd.s32 %s81, 1
      %s83 = scalar_select %p80, %s81, %s82
      %p86 = pneg %p80
      %p87 = scmp.eq.s32.totalorder %s19, 1
      %p88 = por %p86, %p87
      %p89 = scmp.ne.s32.totalorder %s81, %s84
      %p90 = scmp.eq.s32.totalorder %s19, 0
      %p91 = por %p89, %p90
      %p92 = scmp.ne.s32.totalorder %s81, %s84
      %p93 = scmp.eq.s32.totalorder %s24, 1
      %p94 = por %p92, %p93
      %p95 = scmp.ne.s32.totalorder %s84, %s85
      %p96 = scmp.eq.s32.totalorder %s24, 0
      %p97 = por %p95, %p96
      %p98 = scmp.ne.s32.totalorder %s84, %s85
      %p99 = scmp.eq.s32.totalorder %s25, 1
      %p100 = por %p98, %p99
      %p102 = scmp.ne.s32.totalorder %s85, %s101
      %p103 = scmp.eq.s32.totalorder %s25, 0
      %p104 = por %p102, %p103
      %s106 = sadd.s32 %s105, 1
      %p109 = scmp.eq.s32.totalorder %s19, 1
      %p110 = scmp.ne.s32.totalorder %s105, %s107
      %p111 = scmp.eq.s32.totalorder %s19, 0
      %p112 = por %p110, %p111
      %p113 = scmp.ne.s32.totalorder %s105, %s107
      %p114 = scmp.eq.s32.totalorder %s24, 1
      %p115 = por %p113, %p114
      %p116 = scmp.ne.s32.totalorder %s107, %s108
      %p117 = scmp.eq.s32.totalorder %s24, 0
      %p118 = por %p116, %p117
      %p119 = scmp.ne.s32.totalorder %s107, %s108
      %p120 = scmp.eq.s32.totalorder %s25, 1
      %p121 = por %p119, %p120
      %p123 = scmp.ne.s32.totalorder %s108, %s122
      %p124 = scmp.eq.s32.totalorder %s25, 0
      %p125 = por %p123, %p124
      %s127 = sadd.s32 %s126, 1
      %p130 = scmp.eq.s32.totalorder %s19, 1
      %p131 = scmp.ne.s32.totalorder %s126, %s128
      %p132 = scmp.eq.s32.totalorder %s19, 0
      %p133 = por %p131, %p132
      %p134 = scmp.ne.s32.totalorder %s126, %s128
      %p135 = scmp.eq.s32.totalorder %s24, 1
      %p136 = por %p134, %p135
      %p137 = scmp.ne.s32.totalorder %s128, %s129
      %p138 = scmp.eq.s32.totalorder %s24, 0
      %p139 = por %p137, %p138
      %p140 = scmp.ne.s32.totalorder %s128, %s129
      %p141 = scmp.eq.s32.totalorder %s25, 1
      %p142 = por %p140, %p141
      %p144 = scmp.ne.s32.totalorder %s129, %s143
      %p145 = scmp.eq.s32.totalorder %s25, 0
      %p146 = por %p144, %p145
      %s148 = sadd.s32 %s147, 1
      %p151 = scmp.eq.s32.totalorder %s19, 1
      %p152 = scmp.ne.s32.totalorder %s147, %s149
      %p153 = scmp.eq.s32.totalorder %s19, 0
      %p154 = por %p152, %p153
      %p155 = scmp.ne.s32.totalorder %s147, %s149
      %p156 = scmp.eq.s32.totalorder %s24, 1
      %p157 = por %p155, %p156
      %p158 = scmp.ne.s32.totalorder %s149, %s150
      %p159 = scmp.eq.s32.totalorder %s24, 0
      %p160 = por %p158, %p159
      %p161 = scmp.ne.s32.totalorder %s149, %s150
      %p162 = scmp.eq.s32.totalorder %s25, 1
      %p163 = por %p161, %p162
      %p165 = scmp.ne.s32.totalorder %s150, %s164
      %p166 = scmp.eq.s32.totalorder %s25, 0
      %p167 = por %p165, %p166
      %s169 = sadd.s32 %s168, 1
      %p172 = scmp.eq.s32.totalorder %s19, 1
      %p173 = scmp.ne.s32.totalorder %s168, %s170
      %p174 = scmp.eq.s32.totalorder %s19, 0
      %p175 = por %p173, %p174
      %p176 = scmp.ne.s32.totalorder %s168, %s170
      %p177 = scmp.eq.s32.totalorder %s24, 1
      %p178 = por %p176, %p177
      %p179 = scmp.ne.s32.totalorder %s170, %s171
      %p180 = scmp.eq.s32.totalorder %s24, 0
      %p181 = por %p179, %p180
      %p182 = scmp.ne.s32.totalorder %s170, %s171
      %p183 = scmp.eq.s32.totalorder %s25, 1
      %p184 = por %p182, %p183
      %p186 = scmp.ne.s32.totalorder %s171, %s185
      %p187 = scmp.eq.s32.totalorder %s25, 0
      %p188 = por %p186, %p187
      %s190 = sadd.s32 %s189, 1
      %p193 = scmp.eq.s32.totalorder %s19, 1
      %p194 = scmp.ne.s32.totalorder %s189, %s191
      %p195 = scmp.eq.s32.totalorder %s19, 0
      %p196 = por %p194, %p195
      %p197 = scmp.ne.s32.totalorder %s189, %s191
      %p198 = scmp.eq.s32.totalorder %s24, 1
      %p199 = por %p197, %p198
      %p200 = scmp.ne.s32.totalorder %s191, %s192
      %p201 = scmp.eq.s32.totalorder %s24, 0
      %p202 = por %p200, %p201
      %p203 = scmp.ne.s32.totalorder %s191, %s192
      %p204 = scmp.eq.s32.totalorder %s25, 1
      %p205 = por %p203, %p204
      %p207 = scmp.ne.s32.totalorder %s192, %s206
      %p208 = scmp.eq.s32.totalorder %s25, 0
      %p209 = por %p207, %p208
      %s211 = sadd.s32 %s210, 1
      %p214 = scmp.eq.s32.totalorder %s19, 1
      %p215 = scmp.ne.s32.totalorder %s210, %s212
      %p216 = scmp.eq.s32.totalorder %s19, 0
      %p217 = por %p215, %p216
      %p218 = scmp.ne.s32.totalorder %s210, %s212
      %p219 = scmp.eq.s32.totalorder %s24, 1
      %p220 = por %p218, %p219
      %p221 = scmp.ne.s32.totalorder %s212, %s213
      %p222 = scmp.eq.s32.totalorder %s24, 0
      %p223 = por %p221, %p222
      %p224 = scmp.ne.s32.totalorder %s212, %s213
      %p225 = scmp.eq.s32.totalorder %s25, 1
      %p226 = por %p224, %p225
      %p228 = scmp.ne.s32.totalorder %s213, %s227
      %p229 = scmp.eq.s32.totalorder %s25, 0
      %p230 = por %p228, %p229
      %s232 = sadd.s32 %s231, 1
      %p235 = scmp.eq.s32.totalorder %s19, 1
      %p236 = scmp.ne.s32.totalorder %s231, %s233
      %p237 = scmp.eq.s32.totalorder %s19, 0
      %p238 = por %p236, %p237
      %p239 = scmp.ne.s32.totalorder %s231, %s233
      %p240 = scmp.eq.s32.totalorder %s24, 1
      %p241 = por %p239, %p240
      %p242 = scmp.ne.s32.totalorder %s233, %s234
      %p243 = scmp.eq.s32.totalorder %s24, 0
      %p244 = por %p242, %p243
      %p245 = scmp.ne.s32.totalorder %s233, %s234
      %p246 = scmp.eq.s32.totalorder %s25, 1
      %p247 = por %p245, %p246
      %p249 = scmp.ne.s32.totalorder %s234, %s248
      %p250 = scmp.eq.s32.totalorder %s25, 0
      %p251 = por %p249, %p250
      %s252 = ssub.s32 %s19, %s26
      %p253 = scmp.eq.s32.totalorder %s252, 0
      %s255 = sadd.s32 %s254, 1
      %s256 = scalar_select %p253, %s254, %s255
      %p259 = pneg %p253
      %p260 = scmp.eq.s32.totalorder %s19, 1
      %p261 = por %p259, %p260
      %p262 = scmp.ne.s32.totalorder %s254, %s257
      %p263 = scmp.eq.s32.totalorder %s19, 0
      %p264 = por %p262, %p263
      %p265 = scmp.ne.s32.totalorder %s254, %s257
      %p266 = scmp.eq.s32.totalorder %s24, 1
      %p267 = por %p265, %p266
      %p268 = scmp.ne.s32.totalorder %s257, %s258
      %p269 = scmp.eq.s32.totalorder %s24, 0
      %p270 = por %p268, %p269
      %p271 = scmp.ne.s32.totalorder %s257, %s258
      %p272 = scmp.eq.s32.totalorder %s25, 1
      %p273 = por %p271, %p272
      %p275 = scmp.ne.s32.totalorder %s258, %s274
      %p276 = scmp.eq.s32.totalorder %s25, 0
      %p277 = por %p275, %p276
      %p278 = scmp.le.s32.totalorder 1, %s19
      %p279 = scmp.lt.s32.totalorder %s19, 3
      %p280 = pnand %p278, %p279
      %p281 = pneg %p280
      // Predicated region
      $region9: #{tpu_custom_call.1} parent=5 // pred_check
        _
      $region10: #{tpu_custom_call.1} parent=5 // pred_check_branch
        %283 = sbr.rel (%p280) target = $region12
      $region11: #{tpu_custom_call.1} parent=5 // pred_region
        %s284 = ssub.s32 %s19, 1
        // Predicated region
        $region13: #{tpu_custom_call.1} parent=11 // pred_check
          %p285 = pneg %p118
        $region14: #{tpu_custom_call.1} parent=11 // pred_check_branch
          %287 = sbr.rel (%p285) target = $region16
        $region15: #{tpu_custom_call.1} parent=11 // pred_region
          _
        $region16: #{tpu_custom_call.1} parent=11 // pred_fallthru
          _
        // Predicated region
        $region17: #{tpu_custom_call.1} parent=11 // pred_check
          %p288 = pneg %p139
        $region18: #{tpu_custom_call.1} parent=11 // pred_check_branch
          %290 = sbr.rel (%p288) target = $region20
        $region19: #{tpu_custom_call.1} parent=11 // pred_region
          _
        $region20: #{tpu_custom_call.1} parent=11 // pred_fallthru
          _
        // Predicated region
        $region21: #{tpu_custom_call.1} parent=11 // pred_check
          %p291 = pneg %p160
        $region22: #{tpu_custom_call.1} parent=11 // pred_check_branch
          %293 = sbr.rel (%p291) target = $region24
        $region23: #{tpu_custom_call.1} parent=11 // pred_region
          _
        $region24: #{tpu_custom_call.1} parent=11 // pred_fallthru
          _
        // Predicated region
        $region25: #{tpu_custom_call.1} parent=11 // pred_check
          %p294 = pneg %p181
        $region26: #{tpu_custom_call.1} parent=11 // pred_check_branch
          %296 = sbr.rel (%p294) target = $region28
        $region27: #{tpu_custom_call.1} parent=11 // pred_region
          _
        $region28: #{tpu_custom_call.1} parent=11 // pred_fallthru
          _
        // Predicated region
        $region29: #{tpu_custom_call.1} parent=11 // pred_check
          %p297 = pneg %p202
        $region30: #{tpu_custom_call.1} parent=11 // pred_check_branch
          %299 = sbr.rel (%p297) target = $region32
        $region31: #{tpu_custom_call.1} parent=11 // pred_region
          _
        $region32: #{tpu_custom_call.1} parent=11 // pred_fallthru
          _
        // Predicated region
        $region33: #{tpu_custom_call.1} parent=11 // pred_check
          %p300 = pneg %p223
        $region34: #{tpu_custom_call.1} parent=11 // pred_check_branch
          %302 = sbr.rel (%p300) target = $region36
        $region35: #{tpu_custom_call.1} parent=11 // pred_region
          _
        $region36: #{tpu_custom_call.1} parent=11 // pred_fallthru
          _
        // Predicated region
        $region37: #{tpu_custom_call.1} parent=11 // pred_check
          %p303 = pneg %p244
        $region38: #{tpu_custom_call.1} parent=11 // pred_check_branch
          %305 = sbr.rel (%p303) target = $region40
        $region39: #{tpu_custom_call.1} parent=11 // pred_region
          _
        $region40: #{tpu_custom_call.1} parent=11 // pred_fallthru
          _
      $region12: #{tpu_custom_call.1} parent=5 // pred_fallthru
        _
      %p306 = scmp.lt.s32.totalorder %s19, 2
      // Predicated region
      $region41: #{tpu_custom_call.1} parent=5 // pred_check
        %p307 = pneg %p306
      $region42: #{tpu_custom_call.1} parent=5 // pred_check_branch
        %309 = sbr.rel (%p307) target = $region44
      $region43: #{tpu_custom_call.1} parent=5 // pred_region
        // Predicated region
        $region45: #{tpu_custom_call.1} parent=43 // pred_check
          %p310 = pneg %p39
        $region46: #{tpu_custom_call.1} parent=43 // pred_check_branch
          %312 = sbr.rel (%p310) target = $region48
        $region47: #{tpu_custom_call.1} parent=43 // pred_region
          %s313 = smul.u32 8, %s19
          %p314 = scmp.lt.s32.totalorder %s313, 15
          %s315 = scalar_select %p314, %s313, 15
          %s316 = smul.addr %s315, 8
          %s317 = scalar_lea.vmem %s0, %s316
          %s318 = smul.u32 8, %s19
        $region48: #{tpu_custom_call.1} parent=43 // pred_fallthru
          _
        // Predicated region
        $region49: #{tpu_custom_call.1} parent=43 // pred_check
          %p319 = pneg %p65
        $region50: #{tpu_custom_call.1} parent=43 // pred_check_branch
          %321 = sbr.rel (%p319) target = $region52
        $region51: #{tpu_custom_call.1} parent=43 // pred_region
          %s322 = smul.u32 8, %s19
          %p323 = scmp.lt.s32.totalorder %s322, 15
          %s324 = scalar_select %p323, %s322, 15
          %s325 = smul.addr %s324, 8
          %s326 = scalar_lea.vmem %s1, %s325
          %s327 = smul.u32 8, %s19
        $region52: #{tpu_custom_call.1} parent=43 // pred_fallthru
          _
        // Predicated region
        $region53: #{tpu_custom_call.1} parent=43 // pred_check
          %p328 = pneg %p91
        $region54: #{tpu_custom_call.1} parent=43 // pred_check_branch
          %330 = sbr.rel (%p328) target = $region56
        $region55: #{tpu_custom_call.1} parent=43 // pred_region
          %p331 = scmp.lt.s32.totalorder %s19, 1
          %s332 = scalar_select %p331, %s19, 1
          %s333 = smul.addr %s332, 8
          %s334 = scalar_lea.vmem %s2, %s333
        $region56: #{tpu_custom_call.1} parent=43 // pred_fallthru
          _
      $region44: #{tpu_custom_call.1} parent=5 // pred_fallthru
        _
      %p335 = scmp.le.s32.totalorder 1, %s19
      %p336 = scmp.lt.s32.totalorder %s19, 3
      %p337 = pnand %p335, %p336
      %p338 = pneg %p337
      // Predicated region
      $region57: #{tpu_custom_call.1} parent=5 // pred_check
        _
      $region58: #{tpu_custom_call.1} parent=5 // pred_check_branch
        %340 = sbr.rel (%p337) target = $region60
      $region59: #{tpu_custom_call.1} parent=5 // pred_region
        %s341 = ssub.s32 %s19, 1
        %s342 = smul.u32 8, %s24
        %p343 = scmp.lt.s32.totalorder %s342, 15
        %s344 = scalar_select %p343, %s342, 15
        %s345 = smul.addr %s344, 8
        %s346 = scalar_lea.vmem %s0, %s345
        %p347 = pneg %p45
        %p348 = pneg %p42
        %s349 = smul.u32 8, %s24
        %p350 = scmp.lt.s32.totalorder %s349, 15
        %s351 = scalar_select %p350, %s349, 15
        %s352 = smul.addr %s351, 8
        %s353 = scalar_lea.vmem %s1, %s352
        %p354 = pneg %p71
        %p355 = pneg %p68
        %p356 = scmp.lt.s32.totalorder %s24, 1
        %s357 = scalar_select %p356, %s24, 1
        %s358 = smul.addr %s357, 8
        %s359 = scalar_lea.vmem %s2, %s358
        %p360 = pneg %p97
        %p361 = pneg %p94
        %p362 = pneg %p118
        %p363 = pneg %p115
        %p364 = pneg %p139
        %p365 = pneg %p136
        %p366 = pneg %p160
        %p367 = pneg %p157
        %p368 = pneg %p181
        %p369 = pneg %p178
        %p370 = pneg %p202
        %p371 = pneg %p199
        %p372 = pneg %p223
        %p373 = pneg %p220
        %p374 = pneg %p244
        %p375 = pneg %p241
        %p376 = pneg %p270
        %p377 = pneg %p267
        %s378 = sand.u32 %s257, 1
        %s379 = scalar_lea.sflag [#allocation3], %s378
        %s380 = sand.u32 %s257, 1
        %s381 = smul.addr %s380, 8
        %s382 = scalar_lea.vmem [#allocation2], %s381
        %s383 = smul.u32 8, %s24
        %p384 = scmp.lt.s32.totalorder %s383, 15
        %s385 = scalar_select %p384, %s383, 15
        %s386 = smul.addr %s385, 8
        %s387 = scalar_lea.vmem %s0, %s386
        %s388 = smul.u32 8, %s24
        %s389 = smul.u32 8, %s24
        %p390 = scmp.lt.s32.totalorder %s389, 15
        %s391 = scalar_select %p390, %s389, 15
        %s392 = smul.addr %s391, 8
        %s393 = scalar_lea.vmem %s1, %s392
        %s394 = smul.u32 8, %s24
        %p395 = scmp.lt.s32.totalorder %s24, 1
        %s396 = scalar_select %p395, %s24, 1
        %s397 = smul.addr %s396, 8
        %s398 = scalar_lea.vmem %s2, %s397
        %v400 = vld [vmem:[%s387] sm:$0xff]
        %v401 = vld [vmem:[%s387 + $0x8] sm:$0xff]
        %v402 = vld [vmem:[%s387 + $0x10] sm:$0xff]
        %v403 = vld [vmem:[%s387 + $0x18] sm:$0xff]
        %v404 = vld [vmem:[%s387 + $0x20] sm:$0xff]
        %v405 = vld [vmem:[%s387 + $0x28] sm:$0xff]
        %v406 = vld [vmem:[%s387 + $0x30] sm:$0xff]
        %v407 = vld [vmem:[%s387 + $0x38] sm:$0xff]
        %v408 = vadd.s32 %v400, 1
        %v409 = vadd.s32 %v401, 1
        %v410 = vadd.s32 %v402, 1
        %v411 = vadd.s32 %v403, 1
        %v412 = vadd.s32 %v404, 1
        %v413 = vadd.s32 %v405, 1
        %v414 = vadd.s32 %v406, 1
        %v415 = vadd.s32 %v407, 1
        %v416 = vld [vmem:[%s393] sm:$0xff]
        %v417 = vld [vmem:[%s393 + $0x8] sm:$0xff]
        %v418 = vld [vmem:[%s393 + $0x10] sm:$0xff]
        %v419 = vld [vmem:[%s393 + $0x18] sm:$0xff]
        %v420 = vld [vmem:[%s393 + $0x20] sm:$0xff]
        %v421 = vld [vmem:[%s393 + $0x28] sm:$0xff]
        %v422 = vld [vmem:[%s393 + $0x30] sm:$0xff]
        %v423 = vld [vmem:[%s393 + $0x38] sm:$0xff]
        %v424 = vmul.u32 %v408, %v416
        %v425 = vmul.u32 %v409, %v417
        %v426 = vmul.u32 %v410, %v418
        %v427 = vmul.u32 %v411, %v419
        %v428 = vmul.u32 %v412, %v420
        %v429 = vmul.u32 %v413, %v421
        %v430 = vmul.u32 %v414, %v422
        %v431 = vmul.u32 %v415, %v423
        %v432 = vlaneseq
        %v433 = vand.u32 %v432, 127
        %434 = vset.pattern.permute.xlu0 0
        %435 = vperm.xlu0 %434, %v424
        %v436 = vpop.permute.xlu0 %435
        %437 = vset.pattern.permute.xlu0 0
        %438 = vperm.xlu0 %437, %v425
        %v439 = vpop.permute.xlu0 %438
        %440 = vset.pattern.permute.xlu0 0
        %441 = vperm.xlu0 %440, %v426
        %v442 = vpop.permute.xlu0 %441
        %443 = vset.pattern.permute.xlu0 0
        %444 = vperm.xlu0 %443, %v427
        %v445 = vpop.permute.xlu0 %444
        %446 = vset.pattern.permute.xlu0 0
        %447 = vperm.xlu0 %446, %v428
        %v448 = vpop.permute.xlu0 %447
        %449 = vset.pattern.permute.xlu0 0
        %450 = vperm.xlu0 %449, %v429
        %v451 = vpop.permute.xlu0 %450
        %452 = vset.pattern.permute.xlu0 0
        %453 = vperm.xlu0 %452, %v430
        %v454 = vpop.permute.xlu0 %453
        %455 = vset.pattern.permute.xlu0 0
        %456 = vperm.xlu0 %455, %v431
        %v457 = vpop.permute.xlu0 %456
        %vm458 = vcmp.eq.s32.totalorder %v436, %v433
        %vm459 = vcmp.eq.s32.totalorder %v439, %v433
        %vm460 = vcmp.eq.s32.totalorder %v442, %v433
        %vm461 = vcmp.eq.s32.totalorder %v445, %v433
        %vm462 = vcmp.eq.s32.totalorder %v448, %v433
        %vm463 = vcmp.eq.s32.totalorder %v451, %v433
        %vm464 = vcmp.eq.s32.totalorder %v454, %v433
        %vm465 = vcmp.eq.s32.totalorder %v457, %v433
        %v466 = vsel %vm458, 1, 0
        %v467 = vsel %vm459, 1, 0
        %v468 = vsel %vm460, 1, 0
        %v469 = vsel %vm461, 1, 0
        %v470 = vsel %vm462, 1, 0
        %v471 = vsel %vm463, 1, 0
        %v472 = vsel %vm464, 1, 0
        %v473 = vsel %vm465, 1, 0
        %v474 = vcvt.s32.f32 %v466
        %v475 = vcvt.s32.f32 %v467
        %v476 = vcvt.s32.f32 %v468
        %v477 = vcvt.s32.f32 %v469
        %v478 = vcvt.s32.f32 %v470
        %v479 = vcvt.s32.f32 %v471
        %v480 = vcvt.s32.f32 %v472
        %v481 = vcvt.s32.f32 %v473
        %v482 = vadd.f32 %v474, 0.0
        %v483 = vadd.f32 %v475, 0.0
        %v484 = vadd.f32 %v476, 0.0
        %v485 = vadd.f32 %v477, 0.0
        %v486 = vadd.f32 %v478, 0.0
        %v487 = vadd.f32 %v479, 0.0
        %v488 = vadd.f32 %v480, 0.0
        %v489 = vadd.f32 %v481, 0.0
        %490 = vset.pattern.permute.xlu0 1
        %491 = vperm.xlu0 %490, %v424
        %v492 = vpop.permute.xlu0 %491
        %493 = vset.pattern.permute.xlu0 1
        %494 = vperm.xlu0 %493, %v425
        %v495 = vpop.permute.xlu0 %494
        %496 = vset.pattern.permute.xlu0 1
        %497 = vperm.xlu0 %496, %v426
        %v498 = vpop.permute.xlu0 %497
        %499 = vset.pattern.permute.xlu0 1
        %500 = vperm.xlu0 %499, %v427
        %v501 = vpop.permute.xlu0 %500
        %502 = vset.pattern.permute.xlu0 1
        %503 = vperm.xlu0 %502, %v428
        %v504 = vpop.permute.xlu0 %503
        %505 = vset.pattern.permute.xlu0 1
        %506 = vperm.xlu0 %505, %v429
        %v507 = vpop.permute.xlu0 %506
        %508 = vset.pattern.permute.xlu0 1
        %509 = vperm.xlu0 %508, %v430
        %v510 = vpop.permute.xlu0 %509
        %511 = vset.pattern.permute.xlu0 1
        %512 = vperm.xlu0 %511, %v431
        %v513 = vpop.permute.xlu0 %512
        %vm514 = vcmp.eq.s32.totalorder %v492, %v433
        %vm515 = vcmp.eq.s32.totalorder %v495, %v433
        %vm516 = vcmp.eq.s32.totalorder %v498, %v433
        %vm517 = vcmp.eq.s32.totalorder %v501, %v433
        %vm518 = vcmp.eq.s32.totalorder %v504, %v433
        %vm519 = vcmp.eq.s32.totalorder %v507, %v433
        %vm520 = vcmp.eq.s32.totalorder %v510, %v433
        %vm521 = vcmp.eq.s32.totalorder %v513, %v433
        %v522 = vsel %vm514, 1, 0
        %v523 = vsel %vm515, 1, 0
        %v524 = vsel %vm516, 1, 0
        %v525 = vsel %vm517, 1, 0
        %v526 = vsel %vm518, 1, 0
        %v527 = vsel %vm519, 1, 0
        %v528 = vsel %vm520, 1, 0
        %v529 = vsel %vm521, 1, 0
        %v530 = vcvt.s32.f32 %v522
        %v531 = vcvt.s32.f32 %v523
        %v532 = vcvt.s32.f32 %v524
        %v533 = vcvt.s32.f32 %v525
        %v534 = vcvt.s32.f32 %v526
        %v535 = vcvt.s32.f32 %v527
        %v536 = vcvt.s32.f32 %v528
        %v537 = vcvt.s32.f32 %v529
        %v538 = vadd.f32 %v482, %v530
        %v539 = vadd.f32 %v483, %v531
        %v540 = vadd.f32 %v484, %v532
        %v541 = vadd.f32 %v485, %v533
        %v542 = vadd.f32 %v486, %v534
        %v543 = vadd.f32 %v487, %v535
        %v544 = vadd.f32 %v488, %v536
        %v545 = vadd.f32 %v489, %v537
        %546 = vset.pattern.permute.xlu0 2
        %547 = vperm.xlu0 %546, %v424
        %v548 = vpop.permute.xlu0 %547
        %549 = vset.pattern.permute.xlu0 2
        %550 = vperm.xlu0 %549, %v425
        %v551 = vpop.permute.xlu0 %550
        %552 = vset.pattern.permute.xlu0 2
        %553 = vperm.xlu0 %552, %v426
        %v554 = vpop.permute.xlu0 %553
        %555 = vset.pattern.permute.xlu0 2
        %556 = vperm.xlu0 %555, %v427
        %v557 = vpop.permute.xlu0 %556
        %558 = vset.pattern.permute.xlu0 2
        %559 = vperm.xlu0 %558, %v428
        %v560 = vpop.permute.xlu0 %559
        %561 = vset.pattern.permute.xlu0 2
        %562 = vperm.xlu0 %561, %v429
        %v563 = vpop.permute.xlu0 %562
        %564 = vset.pattern.permute.xlu0 2
        %565 = vperm.xlu0 %564, %v430
        %v566 = vpop.permute.xlu0 %565
        %567 = vset.pattern.permute.xlu0 2
        %568 = vperm.xlu0 %567, %v431
        %v569 = vpop.permute.xlu0 %568
        %vm570 = vcmp.eq.s32.totalorder %v548, %v433
        %vm571 = vcmp.eq.s32.totalorder %v551, %v433
        %vm572 = vcmp.eq.s32.totalorder %v554, %v433
        %vm573 = vcmp.eq.s32.totalorder %v557, %v433
        %vm574 = vcmp.eq.s32.totalorder %v560, %v433
        %vm575 = vcmp.eq.s32.totalorder %v563, %v433
        %vm576 = vcmp.eq.s32.totalorder %v566, %v433
        %vm577 = vcmp.eq.s32.totalorder %v569, %v433
        %v578 = vsel %vm570, 1, 0
        %v579 = vsel %vm571, 1, 0
        %v580 = vsel %vm572, 1, 0
        %v581 = vsel %vm573, 1, 0
        %v582 = vsel %vm574, 1, 0
        %v583 = vsel %vm575, 1, 0
        %v584 = vsel %vm576, 1, 0
        %v585 = vsel %vm577, 1, 0
        %v586 = vcvt.s32.f32 %v578
        %v587 = vcvt.s32.f32 %v579
        %v588 = vcvt.s32.f32 %v580
        %v589 = vcvt.s32.f32 %v581
        %v590 = vcvt.s32.f32 %v582
        %v591 = vcvt.s32.f32 %v583
        %v592 = vcvt.s32.f32 %v584
        %v593 = vcvt.s32.f32 %v585
        %v594 = vadd.f32 %v538, %v586
        %v595 = vadd.f32 %v539, %v587
        %v596 = vadd.f32 %v540, %v588
        %v597 = vadd.f32 %v541, %v589
        %v598 = vadd.f32 %v542, %v590
        %v599 = vadd.f32 %v543, %v591
        %v600 = vadd.f32 %v544, %v592
        %v601 = vadd.f32 %v545, %v593
        %602 = vset.pattern.permute.xlu0 3
        %603 = vperm.xlu0 %602, %v424
        %v604 = vpop.permute.xlu0 %603
        %605 = vset.pattern.permute.xlu0 3
        %606 = vperm.xlu0 %605, %v425
        %v607 = vpop.permute.xlu0 %606
        %608 = vset.pattern.permute.xlu0 3
        %609 = vperm.xlu0 %608, %v426
        %v610 = vpop.permute.xlu0 %609
        %611 = vset.pattern.permute.xlu0 3
        %612 = vperm.xlu0 %611, %v427
        %v613 = vpop.permute.xlu0 %612
        %614 = vset.pattern.permute.xlu0 3
        %615 = vperm.xlu0 %614, %v428
        %v616 = vpop.permute.xlu0 %615
        %617 = vset.pattern.permute.xlu0 3
        %618 = vperm.xlu0 %617, %v429
        %v619 = vpop.permute.xlu0 %618
        %620 = vset.pattern.permute.xlu0 3
        %621 = vperm.xlu0 %620, %v430
        %v622 = vpop.permute.xlu0 %621
        %623 = vset.pattern.permute.xlu0 3
        %624 = vperm.xlu0 %623, %v431
        %v625 = vpop.permute.xlu0 %624
        %vm626 = vcmp.eq.s32.totalorder %v604, %v433
        %vm627 = vcmp.eq.s32.totalorder %v607, %v433
        %vm628 = vcmp.eq.s32.totalorder %v610, %v433
        %vm629 = vcmp.eq.s32.totalorder %v613, %v433
        %vm630 = vcmp.eq.s32.totalorder %v616, %v433
        %vm631 = vcmp.eq.s32.totalorder %v619, %v433
        %vm632 = vcmp.eq.s32.totalorder %v622, %v433
        %vm633 = vcmp.eq.s32.totalorder %v625, %v433
        %v634 = vsel %vm626, 1, 0
        %v635 = vsel %vm627, 1, 0
        %v636 = vsel %vm628, 1, 0
        %v637 = vsel %vm629, 1, 0
        %v638 = vsel %vm630, 1, 0
        %v639 = vsel %vm631, 1, 0
        %v640 = vsel %vm632, 1, 0
        %v641 = vsel %vm633, 1, 0
        %v642 = vcvt.s32.f32 %v634
        %v643 = vcvt.s32.f32 %v635
        %v644 = vcvt.s32.f32 %v636
        %v645 = vcvt.s32.f32 %v637
        %v646 = vcvt.s32.f32 %v638
        %v647 = vcvt.s32.f32 %v639
        %v648 = vcvt.s32.f32 %v640
        %v649 = vcvt.s32.f32 %v641
        %v650 = vadd.f32 %v594, %v642
        %v651 = vadd.f32 %v595, %v643
        %v652 = vadd.f32 %v596, %v644
        %v653 = vadd.f32 %v597, %v645
        %v654 = vadd.f32 %v598, %v646
        %v655 = vadd.f32 %v599, %v647
        %v656 = vadd.f32 %v600, %v648
        %v657 = vadd.f32 %v601, %v649
        %v658 = vpack.c.bf16 %v651, %v650
        %v659 = vpack.c.bf16 %v653, %v652
        %v660 = vpack.c.bf16 %v655, %v654
        %v661 = vpack.c.bf16 %v657, %v656
        %v662 = vld [vmem:[%s4] sm:$0xf]
        %v663 = vld [vmem:[%s4 + $0x4] sm:$0xf]
        %v664 = vld [vmem:[%s4 + $0x8] sm:$0xf]
        %v665 = vld [vmem:[%s4 + $0xc] sm:$0xf]
        %v666 = vld [vmem:[%s4 + $0x10] sm:$0xf]
        %v667 = vld [vmem:[%s4 + $0x14] sm:$0xf]
        %v668 = vld [vmem:[%s4 + $0x18] sm:$0xf]
        %v669 = vld [vmem:[%s4 + $0x1c] sm:$0xf]
        %v670 = vld [vmem:[%s4 + $0x20] sm:$0xf]
        %v671 = vld [vmem:[%s4 + $0x24] sm:$0xf]
        %v672 = vld [vmem:[%s4 + $0x28] sm:$0xf]
        %v673 = vld [vmem:[%s4 + $0x2c] sm:$0xf]
        %v674 = vld [vmem:[%s4 + $0x30] sm:$0xf]
        %v675 = vld [vmem:[%s4 + $0x34] sm:$0xf]
        %v676 = vld [vmem:[%s4 + $0x38] sm:$0xf]
        %v677 = vld [vmem:[%s4 + $0x3c] sm:$0xf]
        %v678 = vld [vmem:[%s5] sm:$0x1]
        %v680 = vlaneseq
        %v681 = vshrl.u32 %v680, 7
        %v682 = vsub.s32 0, %v681
        %v683 = vrot.slane %v678, %v682
        %v701 = vunpack.c.l.b16 %v662
        %v702 = vunpack.c.l.b16 %v663
        %v703 = vunpack.c.l.b16 %v664
        %v704 = vunpack.c.l.b16 %v665
        %v705 = vunpack.c.l.b16 %v666
        %v706 = vunpack.c.l.b16 %v667
        %v707 = vunpack.c.l.b16 %v668
        %v708 = vunpack.c.l.b16 %v669
        %v709 = vunpack.c.l.b16 %v670
        %v710 = vunpack.c.l.b16 %v671
        %v711 = vunpack.c.l.b16 %v672
        %v712 = vunpack.c.l.b16 %v673
        %v713 = vunpack.c.l.b16 %v674
        %v714 = vunpack.c.l.b16 %v675
        %v715 = vunpack.c.l.b16 %v676
        %v716 = vunpack.c.l.b16 %v677
        %v717 = vpack.c.b16 %v702, %v701
        %v718 = vpack.c.b16 %v704, %v703
        %v719 = vpack.c.b16 %v706, %v705
        %v720 = vpack.c.b16 %v708, %v707
        %v721 = vpack.c.b16 %v710, %v709
        %v722 = vpack.c.b16 %v712, %v711
        %v723 = vpack.c.b16 %v714, %v713
        %v724 = vpack.c.b16 %v716, %v715
        %733 = vmatprep.subr.bf16.mxu0 0
        %734 = vmatpush1.bf16.msra.mxu0 %v717
        %735 = vmatprep.subr.bf16.mxu0 0
        %736 = vmatpush1.bf16.msra.mxu0 %v718
        %737 = vmatprep.subr.bf16.mxu0 0
        %738 = vmatpush1.bf16.msra.mxu0 %v719
        %739 = vmatprep.subr.bf16.mxu0 0
        %740 = vmatpush1.bf16.msra.mxu0 %v720
        %741 = vmatprep.subr.bf16.mxu0 0
        %742 = vmatpush1.bf16.msra.mxu0 %v721
        %743 = vmatprep.subr.bf16.mxu0 0
        %744 = vmatpush1.bf16.msra.mxu0 %v722
        %745 = vmatprep.subr.bf16.mxu0 0
        %746 = vmatpush1.bf16.msra.mxu0 %v723
        %747 = vmatprep.subr.bf16.mxu0 0
        %748 = vmatpush1.bf16.msra.mxu0 %v724
        %749 = vmatprep.subr.bf16.mxu0 0
        %750 = vmatpush1.bf16.msra.mxu0 0
        %751 = vmatprep.subr.bf16.mxu0 0
        %752 = vmatpush1.bf16.msra.mxu0 0
        %753 = vmatprep.subr.bf16.mxu0 0
        %754 = vmatpush1.bf16.msra.mxu0 0
        %755 = vmatprep.subr.bf16.mxu0 0
        %756 = vmatpush1.bf16.msra.mxu0 0
        %757 = vmatprep.subr.bf16.mxu0 0
        %758 = vmatpush1.bf16.msra.mxu0 0
        %759 = vmatprep.subr.bf16.mxu0 0
        %760 = vmatpush1.bf16.msra.mxu0 0
        %761 = vmatprep.subr.bf16.mxu0 0
        %762 = vmatpush1.bf16.msra.mxu0 0
        %763 = vmatprep.subr.bf16.mxu0 0
        %764 = vmatpush1.bf16.msra.mxu0 0
        %765 = vmatprep.mubr.bf16.mxu0 0
        %766 = vmatmul.mubr.bf16.gmra.mrb[0].mxu0 %v658
        %v767 = vpop.f32.mrb[0].mxu0
        %v768 = vadd.f32 %v683, %v767
        %v769 = vpop.f32.mrb[0].mxu0
        %v770 = vpop.f32.mrb[0].mxu0
        %v771 = vadd.f32 %v683, %v770
        %v772 = vpop.f32.mrb[0].mxu0
        %773 = vmatprep.mubr.bf16.mxu0 0
        %774 = vmatmul.mubr.bf16.gmra.mrb[0].mxu0 %v659
        %v775 = vpop.f32.mrb[0].mxu0
        %v776 = vadd.f32 %v683, %v775
        %v777 = vpop.f32.mrb[0].mxu0
        %v778 = vpop.f32.mrb[0].mxu0
        %v779 = vadd.f32 %v683, %v778
        %v780 = vpop.f32.mrb[0].mxu0
        %781 = vmatprep.mubr.bf16.mxu0 0
        %782 = vmatmul.mubr.bf16.gmra.mrb[0].mxu0 %v660
        %v783 = vpop.f32.mrb[0].mxu0
        %v784 = vadd.f32 %v683, %v783
        %v785 = vpop.f32.mrb[0].mxu0
        %v786 = vpop.f32.mrb[0].mxu0
        %v787 = vadd.f32 %v683, %v786
        %v788 = vpop.f32.mrb[0].mxu0
        %789 = vmatprep.mubr.bf16.mxu0 0
        %790 = vmatmul.mubr.bf16.gmra.mrb[0].mxu0 %v661
        %v791 = vpop.f32.mrb[0].mxu0
        %v792 = vadd.f32 %v683, %v791
        %v793 = vpop.f32.mrb[0].mxu0
        %v794 = vpop.f32.mrb[0].mxu0
        %v795 = vadd.f32 %v683, %v794
        %v796 = vpop.f32.mrb[0].mxu0
        %797 = vdwg.mxu0
        %v798 = vmax.f32 %v768, 0.0
        %v799 = vmax.f32 %v771, 0.0
        %v800 = vmax.f32 %v776, 0.0
        %v801 = vmax.f32 %v779, 0.0
        %v802 = vmax.f32 %v784, 0.0
        %v803 = vmax.f32 %v787, 0.0
        %v804 = vmax.f32 %v792, 0.0
        %v805 = vmax.f32 %v795, 0.0
        %v806 = vld [vmem:[%s3] sm:$0xff]
        %vm807 = vcmask 523264
        %v809 = vsel %vm807, %v806, 0
        %811 = vmatprep.subr.mxu0 0.0
        %812 = vmatpush1.msra.mxu0 %v798
        %813 = vmatprep.subr.mxu0 0.0
        %814 = vmatpush1.msra.mxu0 %v799
        %815 = vmatprep.subr.mxu0 0.0
        %816 = vmatpush1.msra.mxu0 %v800
        %817 = vmatprep.subr.mxu0 0.0
        %818 = vmatpush1.msra.mxu0 %v801
        %819 = vmatprep.subr.mxu0 0.0
        %820 = vmatpush1.msra.mxu0 %v802
        %821 = vmatprep.subr.mxu0 0.0
        %822 = vmatpush1.msra.mxu0 %v803
        %823 = vmatprep.subr.mxu0 0.0
        %824 = vmatpush1.msra.mxu0 %v804
        %825 = vmatprep.subr.mxu0 0.0
        %826 = vmatpush1.msra.mxu0 %v805
        %827 = vmatprep.subr.mxu0 0.0
        %828 = vmatpush1.msra.mxu0 0.0
        %829 = vmatprep.subr.mxu0 0.0
        %830 = vmatpush1.msra.mxu0 0.0
        %831 = vmatprep.subr.mxu0 0.0
        %832 = vmatpush1.msra.mxu0 0.0
        %833 = vmatprep.subr.mxu0 0.0
        %834 = vmatpush1.msra.mxu0 0.0
        %835 = vmatprep.subr.mxu0 0.0
        %836 = vmatpush1.msra.mxu0 0.0
        %837 = vmatprep.subr.mxu0 0.0
        %838 = vmatpush1.msra.mxu0 0.0
        %839 = vmatprep.subr.mxu0 0.0
        %840 = vmatpush1.msra.mxu0 0.0
        %841 = vmatprep.subr.mxu0 0.0
        %842 = vmatpush1.msra.mxu0 0.0
        %843 = vmatprep.subr.mxu0 0.0
        %844 = vmatpush1.msra.mxu0 0.0
        %845 = vmatprep.subr.mxu0 0.0
        %846 = vmatpush1.msra.mxu0 0.0
        %847 = vmatprep.subr.mxu0 0.0
        %848 = vmatpush1.msra.mxu0 0.0
        %849 = vmatprep.subr.mxu0 0.0
        %850 = vmatpush1.msra.mxu0 0.0
        %851 = vmatprep.subr.mxu0 0.0
        %852 = vmatpush1.msra.mxu0 0.0
        %853 = vmatprep.subr.mxu0 0.0
        %854 = vmatpush1.msra.mxu0 0.0
        %855 = vmatprep.subr.mxu0 0.0
        %856 = vmatpush1.msra.mxu0 0.0
        %857 = vmatprep.subr.mxu0 0.0
        %858 = vmatpush1.msra.mxu0 0.0
        %859 = vmatprep.subr.mxu0 0.0
        %860 = vmatpush1.msra.mxu0 0.0
        %861 = vmatprep.subr.mxu0 0.0
        %862 = vmatpush1.msra.mxu0 0.0
        %863 = vmatprep.subr.mxu0 0.0
        %864 = vmatpush1.msra.mxu0 0.0
        %865 = vmatprep.subr.mxu0 0.0
        %866 = vmatpush1.msra.mxu0 0.0
        %867 = vmatprep.subr.mxu0 0.0
        %868 = vmatpush1.msra.mxu0 0.0
        %869 = vmatprep.subr.mxu0 0.0
        %870 = vmatpush1.msra.mxu0 0.0
        %871 = vmatprep.subr.mxu0 0.0
        %872 = vmatpush1.msra.mxu0 0.0
        %873 = vmatprep.subr.mxu0 0.0
        %874 = vmatpush1.msra.mxu0 0.0
        %875 = vmatprep.mubr.f32.mxu0 0.0
        %876 = vmatmul.mubr.f32.gmra.mrb[0].mxu0 %v809
        %v877 = vpop.f32.mrb[0].mxu0
        %v878 = vadd.f32 0.0, %v877
        %v879 = vpop.f32.mrb[0].mxu0
        %880 = vdwg.mxu0
        %v881 = vpack.c.bf16 %v878, %v878
        %v882 = vld [vmem:[%s6] sm:$0xf]
        %v883 = vld [vmem:[%s6 + $0x4] sm:$0xf]
        %v884 = vld [vmem:[%s6 + $0x8] sm:$0xf]
        %v885 = vld [vmem:[%s6 + $0xc] sm:$0xf]
        %v886 = vld [vmem:[%s6 + $0x10] sm:$0xf]
        %v887 = vld [vmem:[%s6 + $0x14] sm:$0xf]
        %v888 = vld [vmem:[%s6 + $0x18] sm:$0xf]
        %v889 = vld [vmem:[%s6 + $0x1c] sm:$0xf]
        %v890 = vld [vmem:[%s6 + $0x20] sm:$0xf]
        %v891 = vld [vmem:[%s6 + $0x24] sm:$0xf]
        %v892 = vld [vmem:[%s6 + $0x28] sm:$0xf]
        %v893 = vld [vmem:[%s6 + $0x2c] sm:$0xf]
        %v894 = vld [vmem:[%s6 + $0x30] sm:$0xf]
        %v895 = vld [vmem:[%s6 + $0x34] sm:$0xf]
        %v896 = vld [vmem:[%s6 + $0x38] sm:$0xf]
        %v897 = vld [vmem:[%s6 + $0x3c] sm:$0xf]
        %v898 = vld [vmem:[%s7] sm:$0x1]
        %v900 = vlaneseq
        %v901 = vshrl.u32 %v900, 7
        %v902 = vsub.s32 0, %v901
        %v903 = vrot.slane %v898, %v902
        %v921 = vunpack.c.l.b16 %v882
        %v922 = vunpack.c.l.b16 %v883
        %v923 = vunpack.c.l.b16 %v884
        %v924 = vunpack.c.l.b16 %v885
        %v925 = vunpack.c.l.b16 %v886
        %v926 = vunpack.c.l.b16 %v887
        %v927 = vunpack.c.l.b16 %v888
        %v928 = vunpack.c.l.b16 %v889
        %v929 = vunpack.c.l.b16 %v890
        %v930 = vunpack.c.l.b16 %v891
        %v931 = vunpack.c.l.b16 %v892
        %v932 = vunpack.c.l.b16 %v893
        %v933 = vunpack.c.l.b16 %v894
        %v934 = vunpack.c.l.b16 %v895
        %v935 = vunpack.c.l.b16 %v896
        %v936 = vunpack.c.l.b16 %v897
        %v937 = vpack.c.b16 %v922, %v921
        %v938 = vpack.c.b16 %v924, %v923
        %v939 = vpack.c.b16 %v926, %v925
        %v940 = vpack.c.b16 %v928, %v927
        %v941 = vpack.c.b16 %v930, %v929
        %v942 = vpack.c.b16 %v932, %v931
        %v943 = vpack.c.b16 %v934, %v933
        %v944 = vpack.c.b16 %v936, %v935
        %953 = vmatprep.subr.bf16.mxu0 0
        %954 = vmatpush1.bf16.msra.mxu0 %v937
        %955 = vmatprep.subr.bf16.mxu0 0
        %956 = vmatpush1.bf16.msra.mxu0 %v938
        %957 = vmatprep.subr.bf16.mxu0 0
        %958 = vmatpush1.bf16.msra.mxu0 %v939
        %959 = vmatprep.subr.bf16.mxu0 0
        %960 = vmatpush1.bf16.msra.mxu0 %v940
        %961 = vmatprep.subr.bf16.mxu0 0
        %962 = vmatpush1.bf16.msra.mxu0 %v941
        %963 = vmatprep.subr.bf16.mxu0 0
        %964 = vmatpush1.bf16.msra.mxu0 %v942
        %965 = vmatprep.subr.bf16.mxu0 0
        %966 = vmatpush1.bf16.msra.mxu0 %v943
        %967 = vmatprep.subr.bf16.mxu0 0
        %968 = vmatpush1.bf16.msra.mxu0 %v944
        %969 = vmatprep.subr.bf16.mxu0 0
        %970 = vmatpush1.bf16.msra.mxu0 0
        %971 = vmatprep.subr.bf16.mxu0 0
        %972 = vmatpush1.bf16.msra.mxu0 0
        %973 = vmatprep.subr.bf16.mxu0 0
        %974 = vmatpush1.bf16.msra.mxu0 0
        %975 = vmatprep.subr.bf16.mxu0 0
        %976 = vmatpush1.bf16.msra.mxu0 0
        %977 = vmatprep.subr.bf16.mxu0 0
        %978 = vmatpush1.bf16.msra.mxu0 0
        %979 = vmatprep.subr.bf16.mxu0 0
        %980 = vmatpush1.bf16.msra.mxu0 0
        %981 = vmatprep.subr.bf16.mxu0 0
        %982 = vmatpush1.bf16.msra.mxu0 0
        %983 = vmatprep.subr.bf16.mxu0 0
        %984 = vmatpush1.bf16.msra.mxu0 0
        %985 = vmatprep.mubr.bf16.mxu0 0
        %986 = vmatmul.mubr.bf16.gmra.mrb[0].mxu0 %v881
        %v987 = vpop.f32.mrb[0].mxu0
        %v988 = vadd.f32 %v903, %v987
        %v989 = vpop.f32.mrb[0].mxu0
        %v990 = vpop.f32.mrb[0].mxu0
        %v991 = vpop.f32.mrb[0].mxu0
        %992 = vdwg.mxu0
        %v993 = vmax.f32 %v988, 0.0
        %v994 = vpack.c.bf16 %v993, %v993
        %v995 = vld [vmem:[%s8] sm:$0xf]
        %v996 = vld [vmem:[%s8 + $0x4] sm:$0xf]
        %v997 = vld [vmem:[%s8 + $0x8] sm:$0xf]
        %v998 = vld [vmem:[%s8 + $0xc] sm:$0xf]
        %v999 = vld [vmem:[%s8 + $0x10] sm:$0xf]
        %v1000 = vld [vmem:[%s8 + $0x14] sm:$0xf]
        %v1001 = vld [vmem:[%s8 + $0x18] sm:$0xf]
        %v1002 = vld [vmem:[%s8 + $0x1c] sm:$0xf]
        %v1003 = vld [vmem:[%s8 + $0x20] sm:$0xf]
        %v1004 = vld [vmem:[%s8 + $0x24] sm:$0xf]
        %v1005 = vld [vmem:[%s8 + $0x28] sm:$0xf]
        %v1006 = vld [vmem:[%s8 + $0x2c] sm:$0xf]
        %v1007 = vld [vmem:[%s8 + $0x30] sm:$0xf]
        %v1008 = vld [vmem:[%s8 + $0x34] sm:$0xf]
        %v1009 = vld [vmem:[%s8 + $0x38] sm:$0xf]
        %v1010 = vld [vmem:[%s8 + $0x3c] sm:$0xf]
        %v1011 = vld [vmem:[%s9] sm:$0x1]
        %v1013 = vlaneseq
        %v1014 = vshrl.u32 %v1013, 7
        %v1015 = vsub.s32 0, %v1014
        %v1016 = vrot.slane %v1011, %v1015
        %v1034 = vunpack.c.l.b16 %v995
        %v1035 = vunpack.c.l.b16 %v996
        %v1036 = vunpack.c.l.b16 %v997
        %v1037 = vunpack.c.l.b16 %v998
        %v1038 = vunpack.c.l.b16 %v999
        %v1039 = vunpack.c.l.b16 %v1000
        %v1040 = vunpack.c.l.b16 %v1001
        %v1041 = vunpack.c.l.b16 %v1002
        %v1042 = vunpack.c.l.b16 %v1003
        %v1043 = vunpack.c.l.b16 %v1004
        %v1044 = vunpack.c.l.b16 %v1005
        %v1045 = vunpack.c.l.b16 %v1006
        %v1046 = vunpack.c.l.b16 %v1007
        %v1047 = vunpack.c.l.b16 %v1008
        %v1048 = vunpack.c.l.b16 %v1009
        %v1049 = vunpack.c.l.b16 %v1010
        %v1050 = vpack.c.b16 %v1035, %v1034
        %v1051 = vpack.c.b16 %v1037, %v1036
        %v1052 = vpack.c.b16 %v1039, %v1038
        %v1053 = vpack.c.b16 %v1041, %v1040
        %v1054 = vpack.c.b16 %v1043, %v1042
        %v1055 = vpack.c.b16 %v1045, %v1044
        %v1056 = vpack.c.b16 %v1047, %v1046
        %v1057 = vpack.c.b16 %v1049, %v1048
        %1066 = vmatprep.subr.bf16.mxu0 0
        %1067 = vmatpush1.bf16.msra.mxu0 %v1050
        %1068 = vmatprep.subr.bf16.mxu0 0
        %1069 = vmatpush1.bf16.msra.mxu0 %v1051
        %1070 = vmatprep.subr.bf16.mxu0 0
        %1071 = vmatpush1.bf16.msra.mxu0 %v1052
        %1072 = vmatprep.subr.bf16.mxu0 0
        %1073 = vmatpush1.bf16.msra.mxu0 %v1053
        %1074 = vmatprep.subr.bf16.mxu0 0
        %1075 = vmatpush1.bf16.msra.mxu0 %v1054
        %1076 = vmatprep.subr.bf16.mxu0 0
        %1077 = vmatpush1.bf16.msra.mxu0 %v1055
        %1078 = vmatprep.subr.bf16.mxu0 0
        %1079 = vmatpush1.bf16.msra.mxu0 %v1056
        %1080 = vmatprep.subr.bf16.mxu0 0
        %1081 = vmatpush1.bf16.msra.mxu0 %v1057
        %1082 = vmatprep.subr.bf16.mxu0 0
        %1083 = vmatpush1.bf16.msra.mxu0 0
        %1084 = vmatprep.subr.bf16.mxu0 0
        %1085 = vmatpush1.bf16.msra.mxu0 0
        %1086 = vmatprep.subr.bf16.mxu0 0
        %1087 = vmatpush1.bf16.msra.mxu0 0
        %1088 = vmatprep.subr.bf16.mxu0 0
        %1089 = vmatpush1.bf16.msra.mxu0 0
        %1090 = vmatprep.subr.bf16.mxu0 0
        %1091 = vmatpush1.bf16.msra.mxu0 0
        %1092 = vmatprep.subr.bf16.mxu0 0
        %1093 = vmatpush1.bf16.msra.mxu0 0
        %1094 = vmatprep.subr.bf16.mxu0 0
        %1095 = vmatpush1.bf16.msra.mxu0 0
        %1096 = vmatprep.subr.bf16.mxu0 0
        %1097 = vmatpush1.bf16.msra.mxu0 0
        %1098 = vmatprep.mubr.bf16.mxu0 0
        %1099 = vmatmul.mubr.bf16.gmra.mrb[0].mxu0 %v994
        %v1100 = vpop.f32.mrb[0].mxu0
        %v1101 = vadd.f32 %v1016, %v1100
        %v1102 = vpop.f32.mrb[0].mxu0
        %v1103 = vpop.f32.mrb[0].mxu0
        %v1104 = vpop.f32.mrb[0].mxu0
        %1105 = vdwg.mxu0
        %v1106 = vld [vmem:[%s398] sm:$0xff]
        %vm1107 = vcmp.ne.s32.totalorder %v1106, 0
        %v1108 = vsel %vm1107, %v1101, -1e+12
        %1109 = vmax.xlane.f32.xlu0 %v1108
        %v1110 = vpop.xlane.xlu0 %1109
        %v1111 = vsub.f32 %v1108, %v1110
        %v1112 = vmul.f32 %v1111, 1.442695
        %v1113 = vpow.pop %v1112
        %1114 = vadd.xlane.f32.xlu0 %v1113
        %v1115 = vpop.xlane.xlu0 %1114
        %v1116 = vlog2.pop %v1115
        %v1117 = vmul.f32 %v1116, 0.6931472
        %v1118 = vadd.f32 %v1110, %v1117
        %v1119 = vsub.f32 %v1108, %v1118
        %1120 = vst [vmem:[%s382] sm:$0xff] %v1119
        %s1121 = sand.u32 %s257, 1
        %s1122 = scalar_lea.sflag [#allocation3], %s1121
        %s1123 = sand.u32 %s257, 1
        %s1124 = smul.addr %s1123, 8
        %s1125 = scalar_lea.vmem [#allocation2], %s1124
        // Predicated region
        $region61: #{tpu_custom_call.1} parent=59 // pred_check
          %p1126 = pneg %p267
        $region62: #{tpu_custom_call.1} parent=59 // pred_check_branch
          %1128 = sbr.rel (%p1126) target = $region64
        $region63: #{tpu_custom_call.1} parent=59 // pred_region
          %s1130 = ssub.s32 128, 128
          %1131 = vsyncadd %s1122, %s1130
          %s1132 = smul.addr %s24, 128
          %s1133 = scalar_lea.hbm %s10, %s1132
          %s1135 = sshll.u32 %s1125, 4
          %s1136 = int_to_ptr.vmem [resolvable:$true] %s1135
          %1138 = dma.vmem_to_hbm [thread:$0]  %s1136, 128, %s1133, %s1122
        $region64: #{tpu_custom_call.1} parent=59 // pred_fallthru
          _
      $region60: #{tpu_custom_call.1} parent=5 // pred_fallthru
        _
      %p1139 = scmp.le.s32.totalorder 2, %s19
      // Predicated region
      $region65: #{tpu_custom_call.1} parent=5 // pred_check
        %p1140 = pneg %p1139
      $region66: #{tpu_custom_call.1} parent=5 // pred_check_branch
        %1142 = sbr.rel (%p1140) target = $region68
      $region67: #{tpu_custom_call.1} parent=5 // pred_region
        %s1143 = ssub.s32 %s19, 2
        // Predicated region
        $region69: #{tpu_custom_call.1} parent=67 // pred_check
          %p1144 = pneg %p273
        $region70: #{tpu_custom_call.1} parent=67 // pred_check_branch
          %1146 = sbr.rel (%p1144) target = $region72
        $region71: #{tpu_custom_call.1} parent=67 // pred_region
          %s1147 = sand.u32 %s258, 1
          %s1148 = scalar_lea.sflag [#allocation3], %s1147
          %s1149 = sand.u32 %s258, 1
          %s1150 = smul.addr %s1149, 8
          %s1151 = scalar_lea.vmem [#allocation2], %s1150
          %1152 = dma.done %s1148, 128
        $region72: #{tpu_custom_call.1} parent=67 // pred_fallthru
          _
      $region68: #{tpu_custom_call.1} parent=5 // pred_fallthru
        _
    $region6: #{tpu_custom_call.1} parent=1 // loop_footer
      %s23 = sadd.s32 1, %s19
    $region7: #{tpu_custom_call.1} parent=1 // loop_footer_branch
      %18 = sbr.rel target = $region3
    $region8: #{tpu_custom_call.1} parent=1 // loop_exit
      _
    %1153 = vsyncpa [#allocation3], 1
    %s1154 = scalar_lea.sflag [#allocation3], 1
    %1155 = vsyncpa %s1154, 1

</llo_original>
